<compile_context>
chip_gen: v5e
topology: v5e:2x2
jax: 0.10.0
libtpu: 0.0.40
codegen_flags: <defaults>
</compile_context>

<pallas_src>
import functools

import jax
import jax.numpy as jnp
from jax.experimental import pallas as pl
from jax.experimental.pallas import tpu as pltpu

EMBED_DIM = 32
NUM_HEADS = 4
HEAD_DIM = EMBED_DIM // NUM_HEADS
MLP_DIM = 64
EPS = 1e-5

# Packed weight-slab layout (lane-tile aligned so in-kernel slices are clean).
_LANE = 128
_WQKV_OFF = 0 * _LANE          # (E, 3E) block-diagonal fused q/k/v weight
_WO_OFF = 1 * _LANE            # (E, E)  wo.T
_W1_OFF = 2 * _LANE            # (E, MLP_DIM) w1.T
_WSLAB_W = 3 * _LANE


def _layernorm(x, gamma, beta):
    mean = jnp.mean(x, axis=-1, keepdims=True)
    var = jnp.mean((x - mean) ** 2, axis=-1, keepdims=True)
    return (x - mean) * jax.lax.rsqrt(var + EPS) * gamma + beta


def transformer_block_kernel(x_ref, wslab_ref, w2t_ref, vec_ref, o_ref, *, seq_len):
    # x_ref: (R, E) row-major input block, R = batch_block * seq_len.
    R, E = x_ref.shape
    D = HEAD_DIM
    H = NUM_HEADS
    S = seq_len
    BB = R // S

    x = x_ref[...].astype(jnp.float32)                       # (R, E)

    # Static slices of the packed operand slabs (4 DMAs total instead of ~14).
    wqkv = wslab_ref[:, _WQKV_OFF:_WQKV_OFF + 3 * E]         # (E, 3E)
    woT = wslab_ref[:, _WO_OFF:_WO_OFF + E]                  # (E, E)
    w1T = wslab_ref[:, _W1_OFF:_W1_OFF + MLP_DIM]            # (E, MLP)
    w2T = w2t_ref[...]                                       # (MLP, E)

    bqkv = vec_ref[0:1, 0:3 * E]
    bo = vec_ref[1:2, 0:E]
    g1 = vec_ref[2:3, 0:E]
    be1 = vec_ref[3:4, 0:E]
    b1 = vec_ref[4:5, 0:MLP_DIM]
    b2 = vec_ref[5:6, 0:E]
    g2 = vec_ref[6:7, 0:E]
    be2 = vec_ref[7:8, 0:E]

    # --- fused q/k/v projection: ONE (R,E)@(E,3E) matmul for all heads ---
    qkv = jnp.dot(x, wqkv, preferred_element_type=jnp.float32) + bqkv   # (R, 3E)

    # --- per-head attention; head-sum folded into the output projection ---
    scale = 1.0 / jnp.sqrt(jnp.float32(D))
    attn = None
    for h in range(H):                                       # static, H = 4
        q = qkv[:, 0 * E + h * D:0 * E + (h + 1) * D].reshape(BB, S, D)
        k = qkv[:, 1 * E + h * D:1 * E + (h + 1) * D].reshape(BB, S, D)
        v = qkv[:, 2 * E + h * D:2 * E + (h + 1) * D].reshape(BB, S, D)
        s = jnp.einsum('bqd,bkd->bqk', q, k,
                       preferred_element_type=jnp.float32) * scale      # (BB, S, S)
        s = s - jnp.max(s, axis=-1, keepdims=True)
        p = jnp.exp(s)
        p = p / jnp.sum(p, axis=-1, keepdims=True)           # exact divide (free here)
        ctx = jnp.einsum('bqk,bkd->bqd', p, v,
                         preferred_element_type=jnp.float32)             # (BB, S, D)
        part = jnp.dot(ctx.reshape(R, D), woT[h * D:(h + 1) * D, :],
                       preferred_element_type=jnp.float32)               # (R, E)
        attn = part if attn is None else attn + part
    attn = attn + bo

    # --- residual + LayerNorm 1 (dropout == identity in eval mode) ---
    h1 = _layernorm(x + attn, g1, be1)

    # --- MLP: Linear -> ReLU -> Linear ---
    m = jnp.dot(h1, w1T, preferred_element_type=jnp.float32) + b1
    m = jnp.maximum(m, 0.0)
    m = jnp.dot(m, w2T, preferred_element_type=jnp.float32) + b2

    # --- residual + LayerNorm 2 ---
    o_ref[...] = _layernorm(h1 + m, g2, be2).astype(o_ref.dtype)


def transformer_block(x, params, batch_block=None):
    B, S, E = x.shape
    assert E == EMBED_DIM
    H = NUM_HEADS

    # Keep grid=(1,) at small sizes on ALL generations (incl. v7x); only split
    # once batch_block * S reaches a few hundred rows per step.
    if batch_block is None:
        batch_block = B
    bb = batch_block
    assert B % bb == 0
    G = B // bb
    if G > 1:
        assert (bb * S) % 8 == 0, "row block must be sublane-aligned when G > 1"

    (wq, bq, wk, bk, wv, bv, wo, bo, g1, be1, w1, b1, w2, b2, g2, be2) = params

    x2d = x.reshape(B * S, E)                                 # single activation input

    # Block-diagonal fused q/k/v weight: same per-head (D,D) weight on each
    # D-wide slice of the E axis -> kron(I_H, w.T).
    eye_h = jnp.eye(H, dtype=jnp.float32)
    wqkv_bd = jnp.concatenate(
        [jnp.kron(eye_h, wq.T), jnp.kron(eye_h, wk.T), jnp.kron(eye_h, wv.T)],
        axis=1)                                               # (E, 3E)
    bqkv = jnp.concatenate([jnp.tile(bq, H), jnp.tile(bk, H), jnp.tile(bv, H)])  # (3E,)

    # Pack all 32-row weights into one lane-tile-aligned slab.
    wslab = jnp.zeros((E, _WSLAB_W), jnp.float32)
    wslab = wslab.at[:, _WQKV_OFF:_WQKV_OFF + 3 * E].set(wqkv_bd)
    wslab = wslab.at[:, _WO_OFF:_WO_OFF + E].set(wo.T)
    wslab = wslab.at[:, _W1_OFF:_W1_OFF + MLP_DIM].set(w1.T)
    w2t = w2.T                                                # (MLP, E)

    # Pack all bias / LayerNorm vectors into one (8, 128) slab.
    def _row(v):
        v = v.astype(jnp.float32)
        return jnp.pad(v, (0, _LANE - v.shape[0]))

    vecs = jnp.stack([_row(bqkv), _row(bo), _row(g1), _row(be1),
                      _row(b1), _row(b2), _row(g2), _row(be2)])          # (8, 128)

    kernel = functools.partial(transformer_block_kernel, seq_len=S)

    out2d = pl.pallas_call(
        kernel,
        out_shape=jax.ShapeDtypeStruct((B * S, E), x.dtype),
        grid=(G,),
        in_specs=[
            pl.BlockSpec((bb * S, E), lambda g: (g, 0)),      # activation rows
            pl.BlockSpec(wslab.shape, lambda g: (0, 0)),      # packed weight slab
            pl.BlockSpec(w2t.shape, lambda g: (0, 0)),        # w2.T
            pl.BlockSpec(vecs.shape, lambda g: (0, 0)),       # packed bias/LN slab
        ],
        out_specs=pl.BlockSpec((bb * S, E), lambda g: (g, 0)),
        compiler_params=pltpu.CompilerParams(dimension_semantics=("parallel",)),
    )(x2d, wslab, w2t, vecs)
    return out2d.reshape(B, S, E)


def reference(x, params):
    """Pure-JAX reference mirroring the PyTorch forward (eval mode)."""
    (wq, bq, wk, bk, wv, bv, wo, bo, g1, be1, w1, b1, w2, b2, g2, be2) = params
    B, S, E = x.shape
    xh = x.reshape(B, S, NUM_HEADS, HEAD_DIM).transpose(0, 2, 1, 3)      # (B, H, S, D)
    q = xh @ wq.T + bq
    k = xh @ wk.T + bk
    v = xh @ wv.T + bv
    s = (q @ jnp.swapaxes(k, -2, -1)) / jnp.sqrt(jnp.float32(HEAD_DIM))
    p = jax.nn.softmax(s, axis=-1)
    o = p @ v                                                            # (B, H, S, D)
    o = o.transpose(0, 2, 1, 3).reshape(B, S, E)
    attn = o @ wo.T + bo

    def ln(z, g, b):
        mu = jnp.mean(z, -1, keepdims=True)
        var = jnp.mean((z - mu) ** 2, -1, keepdims=True)
        return (z - mu) / jnp.sqrt(var + EPS) * g + b

    h1 = ln(x + attn, g1, be1)
    m = jnp.maximum(h1 @ w1.T + b1, 0.0) @ w2.T + b2
    return ln(h1 + m, g2, be2)


def make_params(key):
    ks = jax.random.split(key, 12)

    def lin(k, out_d, in_d):
        kw, kb = jax.random.split(k)
        bound = 1.0 / jnp.sqrt(in_d)
        w = jax.random.uniform(kw, (out_d, in_d), jnp.float32, -bound, bound)
        b = jax.random.uniform(kb, (out_d,), jnp.float32, -bound, bound)
        return w, b

    wq, bq = lin(ks[0], HEAD_DIM, HEAD_DIM)
    wk, bk = lin(ks[1], HEAD_DIM, HEAD_DIM)
    wv, bv = lin(ks[2], HEAD_DIM, HEAD_DIM)
    wo, bo = lin(ks[3], EMBED_DIM, EMBED_DIM)
    w1, b1 = lin(ks[4], MLP_DIM, EMBED_DIM)
    w2, b2 = lin(ks[5], EMBED_DIM, MLP_DIM)
    g1 = jnp.ones((EMBED_DIM,), jnp.float32); be1 = jnp.zeros((EMBED_DIM,), jnp.float32)
    g2 = jnp.ones((EMBED_DIM,), jnp.float32); be2 = jnp.zeros((EMBED_DIM,), jnp.float32)
    return (wq, bq, wk, bk, wv, bv, wo, bo, g1, be1, w1, b1, w2, b2, g2, be2)


if __name__ == "__main__":
    key = jax.random.PRNGKey(0)
    kx, kp = jax.random.split(key)
    B, S = 2, 8
    x = jax.random.normal(kx, (B, S, EMBED_DIM), jnp.float32)
    params = make_params(kp)

    out = jax.block_until_ready(transformer_block(x, params))   # single-step grid
    ref = reference(x, params)
    assert out.shape == (B, S, EMBED_DIM)
    # Softmax is now exact; remaining tolerance covers MXU-vs-XLA default f32
    # matmul precision differences between the kernel and the JAX reference.
    err = float(jnp.max(jnp.abs(out - ref)))
    assert jnp.allclose(out, ref, rtol=2e-3, atol=2e-3), err
    print("KERNEL_OK")
</pallas_src>

<mosaic_0001>
module attributes {stable_mosaic.version = 11 : i64} {
  func.func @transformer_block_kernel(%arg0: i32, %arg1: memref<16x32xf32, #tpu.memory_space<vmem>>, %arg2: memref<32x384xf32, #tpu.memory_space<vmem>>, %arg3: memref<64x32xf32, #tpu.memory_space<vmem>>, %arg4: memref<8x128xf32, #tpu.memory_space<vmem>>, %arg5: memref<16x32xf32, #tpu.memory_space<vmem>>) attributes {dimension_semantics = [#tpu.dimension_semantics<parallel>], iteration_bounds = array<i64: 1>, scalar_prefetch = 0 : i64, scratch_operands = 0 : i64, tpu.core_type = #tpu.core_type<tc>, window_params = [{transform_indices = @transform_0, window_bounds = array<i64: 16, 32>}, {pipeline_mode = #tpu.pipeline_mode<synchronous>, transform_indices = @transform_1, window_bounds = array<i64: 32, 384>}, {pipeline_mode = #tpu.pipeline_mode<synchronous>, transform_indices = @transform_2, window_bounds = array<i64: 64, 32>}, {pipeline_mode = #tpu.pipeline_mode<synchronous>, transform_indices = @transform_3, window_bounds = array<i64: 8, 128>}, {transform_indices = @transform_4, window_bounds = array<i64: 16, 32>}]} {
    %c0 = arith.constant 0 : index
    %c0_0 = arith.constant 0 : index
    %0 = vector.load %arg1[%c0, %c0_0] : memref<16x32xf32, #tpu.memory_space<vmem>>, vector<16x32xf32>
    %c0_1 = arith.constant 0 : index
    %c0_2 = arith.constant 0 : index
    %1 = vector.load %arg2[%c0_1, %c0_2] : memref<32x384xf32, #tpu.memory_space<vmem>>, vector<32x96xf32>
    %c0_3 = arith.constant 0 : index
    %c128 = arith.constant 128 : index
    %2 = vector.load %arg2[%c0_3, %c128] : memref<32x384xf32, #tpu.memory_space<vmem>>, vector<32x32xf32>
    %c0_4 = arith.constant 0 : index
    %c256 = arith.constant 256 : index
    %3 = vector.load %arg2[%c0_4, %c256] : memref<32x384xf32, #tpu.memory_space<vmem>>, vector<32x64xf32>
    %c0_5 = arith.constant 0 : index
    %c0_6 = arith.constant 0 : index
    %4 = vector.load %arg3[%c0_5, %c0_6] : memref<64x32xf32, #tpu.memory_space<vmem>>, vector<64x32xf32>
    %c0_7 = arith.constant 0 : index
    %c0_8 = arith.constant 0 : index
    %5 = vector.load %arg4[%c0_7, %c0_8] : memref<8x128xf32, #tpu.memory_space<vmem>>, vector<1x96xf32>
    %c1 = arith.constant 1 : index
    %c0_9 = arith.constant 0 : index
    %6 = vector.load %arg4[%c1, %c0_9] : memref<8x128xf32, #tpu.memory_space<vmem>>, vector<1x32xf32>
    %c2 = arith.constant 2 : index
    %c0_10 = arith.constant 0 : index
    %7 = vector.load %arg4[%c2, %c0_10] : memref<8x128xf32, #tpu.memory_space<vmem>>, vector<1x32xf32>
    %c3 = arith.constant 3 : index
    %c0_11 = arith.constant 0 : index
    %8 = vector.load %arg4[%c3, %c0_11] : memref<8x128xf32, #tpu.memory_space<vmem>>, vector<1x32xf32>
    %c4 = arith.constant 4 : index
    %c0_12 = arith.constant 0 : index
    %9 = vector.load %arg4[%c4, %c0_12] : memref<8x128xf32, #tpu.memory_space<vmem>>, vector<1x64xf32>
    %c5 = arith.constant 5 : index
    %c0_13 = arith.constant 0 : index
    %10 = vector.load %arg4[%c5, %c0_13] : memref<8x128xf32, #tpu.memory_space<vmem>>, vector<1x32xf32>
    %c6 = arith.constant 6 : index
    %c0_14 = arith.constant 0 : index
    %11 = vector.load %arg4[%c6, %c0_14] : memref<8x128xf32, #tpu.memory_space<vmem>>, vector<1x32xf32>
    %c7 = arith.constant 7 : index
    %c0_15 = arith.constant 0 : index
    %12 = vector.load %arg4[%c7, %c0_15] : memref<8x128xf32, #tpu.memory_space<vmem>>, vector<1x32xf32>
    %cst = arith.constant dense<0.000000e+00> : vector<16x96xf32>
    %13 = tpu.matmul %0, %1, %cst {dimension_numbers = #tpu.dot_dimension_numbers<[1], [0], [0], [1], [0, 0, 1, 1], [], []>} : vector<16x32xf32>, vector<32x96xf32>, vector<16x96xf32> -> vector<16x96xf32>
    %14 = vector.broadcast %5 : vector<1x96xf32> to vector<16x96xf32>
    %15 = arith.addf %13, %14 : vector<16x96xf32>
    %cst_16 = arith.constant 8.000000e+00 : f32
    %16 = math.sqrt %cst_16 : f32
    %cst_17 = arith.constant 1.000000e+00 : f32
    %17 = arith.divf %cst_17, %16 : f32
    %18 = vector.extract_strided_slice %15 {offsets = [0, 0], sizes = [16, 8], strides = [1, 1]} : vector<16x96xf32> to vector<16x8xf32>
    %19 = vector.shape_cast %18 : vector<16x8xf32> to vector<2x8x8xf32>
    %20 = vector.extract_strided_slice %15 {offsets = [0, 32], sizes = [16, 8], strides = [1, 1]} : vector<16x96xf32> to vector<16x8xf32>
    %21 = vector.shape_cast %20 : vector<16x8xf32> to vector<2x8x8xf32>
    %22 = vector.extract_strided_slice %15 {offsets = [0, 64], sizes = [16, 8], strides = [1, 1]} : vector<16x96xf32> to vector<16x8xf32>
    %23 = vector.shape_cast %22 : vector<16x8xf32> to vector<2x8x8xf32>
    "tpu.trace_start"() <{level = 10 : i32, message = "bqd,bkd->bqk"}> : () -> ()
    %cst_18 = arith.constant dense<0.000000e+00> : vector<2x8x8xf32>
    %24 = tpu.matmul %19, %21, %cst_18 {dimension_numbers = #tpu.dot_dimension_numbers<[2], [2], [1], [1], [0, 0, 0, 1, 1, 1], [0], [0]>} : vector<2x8x8xf32>, vector<2x8x8xf32>, vector<2x8x8xf32> -> vector<2x8x8xf32>
    "tpu.trace_stop"() : () -> ()
    %25 = vector.broadcast %17 : f32 to vector<2x8x8xf32>
    %26 = arith.mulf %24, %25 : vector<2x8x8xf32>
    %cst_19 = arith.constant dense<0xFF800000> : vector<2x8xf32>
    %27 = vector.multi_reduction <maximumf>, %26, %cst_19 [2] : vector<2x8x8xf32> to vector<2x8xf32>
    %28 = vector.shape_cast %27 : vector<2x8xf32> to vector<2x8x1xf32>
    %29 = vector.broadcast %28 : vector<2x8x1xf32> to vector<2x8x8xf32>
    %30 = arith.subf %26, %29 : vector<2x8x8xf32>
    %31 = math.exp %30 : vector<2x8x8xf32>
    %cst_20 = arith.constant dense<0.000000e+00> : vector<2x8xf32>
    %32 = vector.multi_reduction <add>, %31, %cst_20 [2] : vector<2x8x8xf32> to vector<2x8xf32>
    %33 = vector.shape_cast %32 : vector<2x8xf32> to vector<2x8x1xf32>
    %34 = vector.broadcast %33 : vector<2x8x1xf32> to vector<2x8x8xf32>
    %35 = arith.divf %31, %34 : vector<2x8x8xf32>
    "tpu.trace_start"() <{level = 10 : i32, message = "bqk,bkd->bqd"}> : () -> ()
    %cst_21 = arith.constant dense<0.000000e+00> : vector<2x8x8xf32>
    %36 = tpu.matmul %35, %23, %cst_21 {dimension_numbers = #tpu.dot_dimension_numbers<[2], [1], [1], [2], [0, 0, 0, 1, 1, 2], [0], [0]>} : vector<2x8x8xf32>, vector<2x8x8xf32>, vector<2x8x8xf32> -> vector<2x8x8xf32>
    "tpu.trace_stop"() : () -> ()
    %37 = vector.shape_cast %36 : vector<2x8x8xf32> to vector<16x8xf32>
    %38 = vector.extract_strided_slice %2 {offsets = [0, 0], sizes = [8, 32], strides = [1, 1]} : vector<32x32xf32> to vector<8x32xf32>
    %cst_22 = arith.constant dense<0.000000e+00> : vector<16x32xf32>
    %39 = tpu.matmul %37, %38, %cst_22 {dimension_numbers = #tpu.dot_dimension_numbers<[1], [0], [0], [1], [0, 0, 1, 1], [], []>} : vector<16x8xf32>, vector<8x32xf32>, vector<16x32xf32> -> vector<16x32xf32>
    %40 = vector.extract_strided_slice %15 {offsets = [0, 8], sizes = [16, 8], strides = [1, 1]} : vector<16x96xf32> to vector<16x8xf32>
    %41 = vector.shape_cast %40 : vector<16x8xf32> to vector<2x8x8xf32>
    %42 = vector.extract_strided_slice %15 {offsets = [0, 40], sizes = [16, 8], strides = [1, 1]} : vector<16x96xf32> to vector<16x8xf32>
    %43 = vector.shape_cast %42 : vector<16x8xf32> to vector<2x8x8xf32>
    %44 = vector.extract_strided_slice %15 {offsets = [0, 72], sizes = [16, 8], strides = [1, 1]} : vector<16x96xf32> to vector<16x8xf32>
    %45 = vector.shape_cast %44 : vector<16x8xf32> to vector<2x8x8xf32>
    "tpu.trace_start"() <{level = 10 : i32, message = "bqd,bkd->bqk"}> : () -> ()
    %cst_23 = arith.constant dense<0.000000e+00> : vector<2x8x8xf32>
    %46 = tpu.matmul %41, %43, %cst_23 {dimension_numbers = #tpu.dot_dimension_numbers<[2], [2], [1], [1], [0, 0, 0, 1, 1, 1], [0], [0]>} : vector<2x8x8xf32>, vector<2x8x8xf32>, vector<2x8x8xf32> -> vector<2x8x8xf32>
    "tpu.trace_stop"() : () -> ()
    %47 = vector.broadcast %17 : f32 to vector<2x8x8xf32>
    %48 = arith.mulf %46, %47 : vector<2x8x8xf32>
    %cst_24 = arith.constant dense<0xFF800000> : vector<2x8xf32>
    %49 = vector.multi_reduction <maximumf>, %48, %cst_24 [2] : vector<2x8x8xf32> to vector<2x8xf32>
    %50 = vector.shape_cast %49 : vector<2x8xf32> to vector<2x8x1xf32>
    %51 = vector.broadcast %50 : vector<2x8x1xf32> to vector<2x8x8xf32>
    %52 = arith.subf %48, %51 : vector<2x8x8xf32>
    %53 = math.exp %52 : vector<2x8x8xf32>
    %cst_25 = arith.constant dense<0.000000e+00> : vector<2x8xf32>
    %54 = vector.multi_reduction <add>, %53, %cst_25 [2] : vector<2x8x8xf32> to vector<2x8xf32>
    %55 = vector.shape_cast %54 : vector<2x8xf32> to vector<2x8x1xf32>
    %56 = vector.broadcast %55 : vector<2x8x1xf32> to vector<2x8x8xf32>
    %57 = arith.divf %53, %56 : vector<2x8x8xf32>
    "tpu.trace_start"() <{level = 10 : i32, message = "bqk,bkd->bqd"}> : () -> ()
    %cst_26 = arith.constant dense<0.000000e+00> : vector<2x8x8xf32>
    %58 = tpu.matmul %57, %45, %cst_26 {dimension_numbers = #tpu.dot_dimension_numbers<[2], [1], [1], [2], [0, 0, 0, 1, 1, 2], [0], [0]>} : vector<2x8x8xf32>, vector<2x8x8xf32>, vector<2x8x8xf32> -> vector<2x8x8xf32>
    "tpu.trace_stop"() : () -> ()
    %59 = vector.shape_cast %58 : vector<2x8x8xf32> to vector<16x8xf32>
    %60 = vector.extract_strided_slice %2 {offsets = [8, 0], sizes = [8, 32], strides = [1, 1]} : vector<32x32xf32> to vector<8x32xf32>
    %cst_27 = arith.constant dense<0.000000e+00> : vector<16x32xf32>
    %61 = tpu.matmul %59, %60, %cst_27 {dimension_numbers = #tpu.dot_dimension_numbers<[1], [0], [0], [1], [0, 0, 1, 1], [], []>} : vector<16x8xf32>, vector<8x32xf32>, vector<16x32xf32> -> vector<16x32xf32>
    %62 = arith.addf %39, %61 : vector<16x32xf32>
    %63 = vector.extract_strided_slice %15 {offsets = [0, 16], sizes = [16, 8], strides = [1, 1]} : vector<16x96xf32> to vector<16x8xf32>
    %64 = vector.shape_cast %63 : vector<16x8xf32> to vector<2x8x8xf32>
    %65 = vector.extract_strided_slice %15 {offsets = [0, 48], sizes = [16, 8], strides = [1, 1]} : vector<16x96xf32> to vector<16x8xf32>
    %66 = vector.shape_cast %65 : vector<16x8xf32> to vector<2x8x8xf32>
    %67 = vector.extract_strided_slice %15 {offsets = [0, 80], sizes = [16, 8], strides = [1, 1]} : vector<16x96xf32> to vector<16x8xf32>
    %68 = vector.shape_cast %67 : vector<16x8xf32> to vector<2x8x8xf32>
    "tpu.trace_start"() <{level = 10 : i32, message = "bqd,bkd->bqk"}> : () -> ()
    %cst_28 = arith.constant dense<0.000000e+00> : vector<2x8x8xf32>
    %69 = tpu.matmul %64, %66, %cst_28 {dimension_numbers = #tpu.dot_dimension_numbers<[2], [2], [1], [1], [0, 0, 0, 1, 1, 1], [0], [0]>} : vector<2x8x8xf32>, vector<2x8x8xf32>, vector<2x8x8xf32> -> vector<2x8x8xf32>
    "tpu.trace_stop"() : () -> ()
    %70 = vector.broadcast %17 : f32 to vector<2x8x8xf32>
    %71 = arith.mulf %69, %70 : vector<2x8x8xf32>
    %cst_29 = arith.constant dense<0xFF800000> : vector<2x8xf32>
    %72 = vector.multi_reduction <maximumf>, %71, %cst_29 [2] : vector<2x8x8xf32> to vector<2x8xf32>
    %73 = vector.shape_cast %72 : vector<2x8xf32> to vector<2x8x1xf32>
    %74 = vector.broadcast %73 : vector<2x8x1xf32> to vector<2x8x8xf32>
    %75 = arith.subf %71, %74 : vector<2x8x8xf32>
    %76 = math.exp %75 : vector<2x8x8xf32>
    %cst_30 = arith.constant dense<0.000000e+00> : vector<2x8xf32>
    %77 = vector.multi_reduction <add>, %76, %cst_30 [2] : vector<2x8x8xf32> to vector<2x8xf32>
    %78 = vector.shape_cast %77 : vector<2x8xf32> to vector<2x8x1xf32>
    %79 = vector.broadcast %78 : vector<2x8x1xf32> to vector<2x8x8xf32>
    %80 = arith.divf %76, %79 : vector<2x8x8xf32>
    "tpu.trace_start"() <{level = 10 : i32, message = "bqk,bkd->bqd"}> : () -> ()
    %cst_31 = arith.constant dense<0.000000e+00> : vector<2x8x8xf32>
    %81 = tpu.matmul %80, %68, %cst_31 {dimension_numbers = #tpu.dot_dimension_numbers<[2], [1], [1], [2], [0, 0, 0, 1, 1, 2], [0], [0]>} : vector<2x8x8xf32>, vector<2x8x8xf32>, vector<2x8x8xf32> -> vector<2x8x8xf32>
    "tpu.trace_stop"() : () -> ()
    %82 = vector.shape_cast %81 : vector<2x8x8xf32> to vector<16x8xf32>
    %83 = vector.extract_strided_slice %2 {offsets = [16, 0], sizes = [8, 32], strides = [1, 1]} : vector<32x32xf32> to vector<8x32xf32>
    %cst_32 = arith.constant dense<0.000000e+00> : vector<16x32xf32>
    %84 = tpu.matmul %82, %83, %cst_32 {dimension_numbers = #tpu.dot_dimension_numbers<[1], [0], [0], [1], [0, 0, 1, 1], [], []>} : vector<16x8xf32>, vector<8x32xf32>, vector<16x32xf32> -> vector<16x32xf32>
    %85 = arith.addf %62, %84 : vector<16x32xf32>
    %86 = vector.extract_strided_slice %15 {offsets = [0, 24], sizes = [16, 8], strides = [1, 1]} : vector<16x96xf32> to vector<16x8xf32>
    %87 = vector.shape_cast %86 : vector<16x8xf32> to vector<2x8x8xf32>
    %88 = vector.extract_strided_slice %15 {offsets = [0, 56], sizes = [16, 8], strides = [1, 1]} : vector<16x96xf32> to vector<16x8xf32>
    %89 = vector.shape_cast %88 : vector<16x8xf32> to vector<2x8x8xf32>
    %90 = vector.extract_strided_slice %15 {offsets = [0, 88], sizes = [16, 8], strides = [1, 1]} : vector<16x96xf32> to vector<16x8xf32>
    %91 = vector.shape_cast %90 : vector<16x8xf32> to vector<2x8x8xf32>
    "tpu.trace_start"() <{level = 10 : i32, message = "bqd,bkd->bqk"}> : () -> ()
    %cst_33 = arith.constant dense<0.000000e+00> : vector<2x8x8xf32>
    %92 = tpu.matmul %87, %89, %cst_33 {dimension_numbers = #tpu.dot_dimension_numbers<[2], [2], [1], [1], [0, 0, 0, 1, 1, 1], [0], [0]>} : vector<2x8x8xf32>, vector<2x8x8xf32>, vector<2x8x8xf32> -> vector<2x8x8xf32>
    "tpu.trace_stop"() : () -> ()
    %93 = vector.broadcast %17 : f32 to vector<2x8x8xf32>
    %94 = arith.mulf %92, %93 : vector<2x8x8xf32>
    %cst_34 = arith.constant dense<0xFF800000> : vector<2x8xf32>
    %95 = vector.multi_reduction <maximumf>, %94, %cst_34 [2] : vector<2x8x8xf32> to vector<2x8xf32>
    %96 = vector.shape_cast %95 : vector<2x8xf32> to vector<2x8x1xf32>
    %97 = vector.broadcast %96 : vector<2x8x1xf32> to vector<2x8x8xf32>
    %98 = arith.subf %94, %97 : vector<2x8x8xf32>
    %99 = math.exp %98 : vector<2x8x8xf32>
    %cst_35 = arith.constant dense<0.000000e+00> : vector<2x8xf32>
    %100 = vector.multi_reduction <add>, %99, %cst_35 [2] : vector<2x8x8xf32> to vector<2x8xf32>
    %101 = vector.shape_cast %100 : vector<2x8xf32> to vector<2x8x1xf32>
    %102 = vector.broadcast %101 : vector<2x8x1xf32> to vector<2x8x8xf32>
    %103 = arith.divf %99, %102 : vector<2x8x8xf32>
    "tpu.trace_start"() <{level = 10 : i32, message = "bqk,bkd->bqd"}> : () -> ()
    %cst_36 = arith.constant dense<0.000000e+00> : vector<2x8x8xf32>
    %104 = tpu.matmul %103, %91, %cst_36 {dimension_numbers = #tpu.dot_dimension_numbers<[2], [1], [1], [2], [0, 0, 0, 1, 1, 2], [0], [0]>} : vector<2x8x8xf32>, vector<2x8x8xf32>, vector<2x8x8xf32> -> vector<2x8x8xf32>
    "tpu.trace_stop"() : () -> ()
    %105 = vector.shape_cast %104 : vector<2x8x8xf32> to vector<16x8xf32>
    %106 = vector.extract_strided_slice %2 {offsets = [24, 0], sizes = [8, 32], strides = [1, 1]} : vector<32x32xf32> to vector<8x32xf32>
    %cst_37 = arith.constant dense<0.000000e+00> : vector<16x32xf32>
    %107 = tpu.matmul %105, %106, %cst_37 {dimension_numbers = #tpu.dot_dimension_numbers<[1], [0], [0], [1], [0, 0, 1, 1], [], []>} : vector<16x8xf32>, vector<8x32xf32>, vector<16x32xf32> -> vector<16x32xf32>
    %108 = arith.addf %85, %107 : vector<16x32xf32>
    %109 = vector.broadcast %6 : vector<1x32xf32> to vector<16x32xf32>
    %110 = arith.addf %108, %109 : vector<16x32xf32>
    %111 = arith.addf %0, %110 : vector<16x32xf32>
    %cst_38 = arith.constant dense<0.000000e+00> : vector<16xf32>
    %112 = vector.multi_reduction <add>, %111, %cst_38 [1] : vector<16x32xf32> to vector<16xf32>
    %113 = vector.shape_cast %112 : vector<16xf32> to vector<16x1xf32>
    %cst_39 = arith.constant 3.200000e+01 : f32
    %114 = vector.broadcast %cst_39 : f32 to vector<16x1xf32>
    %115 = arith.divf %113, %114 : vector<16x1xf32>
    %116 = vector.broadcast %115 : vector<16x1xf32> to vector<16x32xf32>
    %117 = arith.subf %111, %116 : vector<16x32xf32>
    %118 = arith.mulf %117, %117 : vector<16x32xf32>
    %cst_40 = arith.constant dense<0.000000e+00> : vector<16xf32>
    %119 = vector.multi_reduction <add>, %118, %cst_40 [1] : vector<16x32xf32> to vector<16xf32>
    %120 = vector.shape_cast %119 : vector<16xf32> to vector<16x1xf32>
    %cst_41 = arith.constant 3.200000e+01 : f32
    %121 = vector.broadcast %cst_41 : f32 to vector<16x1xf32>
    %122 = arith.divf %120, %121 : vector<16x1xf32>
    %123 = vector.broadcast %115 : vector<16x1xf32> to vector<16x32xf32>
    %124 = arith.subf %111, %123 : vector<16x32xf32>
    %cst_42 = arith.constant 9.99999974E-6 : f32
    %125 = vector.broadcast %cst_42 : f32 to vector<16x1xf32>
    %126 = arith.addf %122, %125 : vector<16x1xf32>
    %127 = math.rsqrt %126 : vector<16x1xf32>
    %128 = vector.broadcast %127 : vector<16x1xf32> to vector<16x32xf32>
    %129 = arith.mulf %124, %128 : vector<16x32xf32>
    %130 = vector.broadcast %7 : vector<1x32xf32> to vector<16x32xf32>
    %131 = arith.mulf %129, %130 : vector<16x32xf32>
    %132 = vector.broadcast %8 : vector<1x32xf32> to vector<16x32xf32>
    %133 = arith.addf %131, %132 : vector<16x32xf32>
    %cst_43 = arith.constant dense<0.000000e+00> : vector<16x64xf32>
    %134 = tpu.matmul %133, %3, %cst_43 {dimension_numbers = #tpu.dot_dimension_numbers<[1], [0], [0], [1], [0, 0, 1, 1], [], []>} : vector<16x32xf32>, vector<32x64xf32>, vector<16x64xf32> -> vector<16x64xf32>
    %135 = vector.broadcast %9 : vector<1x64xf32> to vector<16x64xf32>
    %136 = arith.addf %134, %135 : vector<16x64xf32>
    %cst_44 = arith.constant 0.000000e+00 : f32
    %137 = vector.broadcast %cst_44 : f32 to vector<16x64xf32>
    %138 = arith.maximumf %136, %137 : vector<16x64xf32>
    %cst_45 = arith.constant dense<0.000000e+00> : vector<16x32xf32>
    %139 = tpu.matmul %138, %4, %cst_45 {dimension_numbers = #tpu.dot_dimension_numbers<[1], [0], [0], [1], [0, 0, 1, 1], [], []>} : vector<16x64xf32>, vector<64x32xf32>, vector<16x32xf32> -> vector<16x32xf32>
    %140 = vector.broadcast %10 : vector<1x32xf32> to vector<16x32xf32>
    %141 = arith.addf %139, %140 : vector<16x32xf32>
    %142 = arith.addf %133, %141 : vector<16x32xf32>
    %cst_46 = arith.constant dense<0.000000e+00> : vector<16xf32>
    %143 = vector.multi_reduction <add>, %142, %cst_46 [1] : vector<16x32xf32> to vector<16xf32>
    %144 = vector.shape_cast %143 : vector<16xf32> to vector<16x1xf32>
    %cst_47 = arith.constant 3.200000e+01 : f32
    %145 = vector.broadcast %cst_47 : f32 to vector<16x1xf32>
    %146 = arith.divf %144, %145 : vector<16x1xf32>
    %147 = vector.broadcast %146 : vector<16x1xf32> to vector<16x32xf32>
    %148 = arith.subf %142, %147 : vector<16x32xf32>
    %149 = arith.mulf %148, %148 : vector<16x32xf32>
    %cst_48 = arith.constant dense<0.000000e+00> : vector<16xf32>
    %150 = vector.multi_reduction <add>, %149, %cst_48 [1] : vector<16x32xf32> to vector<16xf32>
    %151 = vector.shape_cast %150 : vector<16xf32> to vector<16x1xf32>
    %cst_49 = arith.constant 3.200000e+01 : f32
    %152 = vector.broadcast %cst_49 : f32 to vector<16x1xf32>
    %153 = arith.divf %151, %152 : vector<16x1xf32>
    %154 = vector.broadcast %146 : vector<16x1xf32> to vector<16x32xf32>
    %155 = arith.subf %142, %154 : vector<16x32xf32>
    %cst_50 = arith.constant 9.99999974E-6 : f32
    %156 = vector.broadcast %cst_50 : f32 to vector<16x1xf32>
    %157 = arith.addf %153, %156 : vector<16x1xf32>
    %158 = math.rsqrt %157 : vector<16x1xf32>
    %159 = vector.broadcast %158 : vector<16x1xf32> to vector<16x32xf32>
    %160 = arith.mulf %155, %159 : vector<16x32xf32>
    %161 = vector.broadcast %11 : vector<1x32xf32> to vector<16x32xf32>
    %162 = arith.mulf %160, %161 : vector<16x32xf32>
    %163 = vector.broadcast %12 : vector<1x32xf32> to vector<16x32xf32>
    %164 = arith.addf %162, %163 : vector<16x32xf32>
    %c0_51 = arith.constant 0 : index
    %c0_52 = arith.constant 0 : index
    %165 = vector.load %arg5[%c0_51, %c0_52] : memref<16x32xf32, #tpu.memory_space<vmem>>, vector<16x32xf32>
    tpu.vector_store %arg5[%c0_51, %c0_52], %164 {strides = array<i32>} : memref<16x32xf32, #tpu.memory_space<vmem>>, vector<16x32xf32>,
    return
  }
  func.func @transform_0(%arg0: i32) -> (i32, i32) {
    %c0_i32 = arith.constant 0 : i32
    %c0_i32_0 = arith.constant 0 : i32
    return %arg0, %c0_i32 : i32, i32
  }
  func.func @transform_1(%arg0: i32) -> (i32, i32) {
    %c0_i32 = arith.constant 0 : i32
    %c0_i32_0 = arith.constant 0 : i32
    %c0_i32_1 = arith.constant 0 : i32
    return %c0_i32, %c0_i32_0 : i32, i32
  }
  func.func @transform_2(%arg0: i32) -> (i32, i32) {
    %c0_i32 = arith.constant 0 : i32
    %c0_i32_0 = arith.constant 0 : i32
    %c0_i32_1 = arith.constant 0 : i32
    return %c0_i32, %c0_i32_0 : i32, i32
  }
  func.func @transform_3(%arg0: i32) -> (i32, i32) {
    %c0_i32 = arith.constant 0 : i32
    %c0_i32_0 = arith.constant 0 : i32
    %c0_i32_1 = arith.constant 0 : i32
    return %c0_i32, %c0_i32_0 : i32, i32
  }
  func.func @transform_4(%arg0: i32) -> (i32, i32) {
    %c0_i32 = arith.constant 0 : i32
    %c0_i32_0 = arith.constant 0 : i32
    return %arg0, %c0_i32 : i32, i32
  }
}

</mosaic_0001>

<llo_original>
// kernel: tpu_custom_call.1
$region0: #{tpu_custom_call.1}
  #allocation0 [shape = 'u32[]', space=smem, size = 0x4, offset = 0x4, fixed_abs, tag = 'smem constant byte address 0x4 - core index']
  #allocation1 [shape = 'u32[72,128]{1,0:T(1,128)}', space=vmem, size = 0x9000, scoped, tag = 'internal scratch']
  %s0 = inlined_call_operand.hbm [shape: f32[16,32], index: 0, kind: input, shape index: {}]
  %s1 = inlined_call_operand.vmem [shape: f32[32,384], index: 1, kind: input, shape index: {}]
  %s2 = inlined_call_operand.vmem [shape: f32[64,32], index: 2, kind: input, shape index: {}]
  %s3 = inlined_call_operand.hbm [shape: f32[8,128], index: 3, kind: input, shape index: {}]
  %s4 = inlined_call_operand.hbm [shape: f32[16,32], index: 4, kind: output, shape index: {}]
  %s5 = sld [smem:[#allocation0]]
  $region34: #{tpu_custom_call.1} parent=0
    _
  %s7 = ssub.s32 1, %s5
  %s8 = scalar_select 0, %s7, %s5
  $region1: #{tpu_custom_call.1} parent=0
    #allocation2 [shape = 'u8[8192]{0}', space=vmem, size = 0x2000, scoped, tag = 'input window, operand 0, single buffered']
    #allocation3 [shape = 's32[1]{0}', space=sflag, size = 0x4, scoped, tag = 'scoped memory for tpu_custom_call.1']
    #allocation4 [shape = 's32[1]{0}', space=sflag, size = 0x4, scoped, tag = 'scoped memory for tpu_custom_call.1']
    #allocation5 [shape = 'u8[4096]{0}', space=vmem, size = 0x1000, scoped, tag = 'input window, operand 3, single buffered']
    #allocation6 [shape = 's32[1]{0}', space=sflag, size = 0x4, scoped, tag = 'scoped memory for tpu_custom_call.1']
    #allocation7 [shape = 'u8[8192]{0}', space=vmem, size = 0x2000, scoped, tag = 'output window, operand 0, single buffered']
    %9 = vsyncpa [#allocation3], 0
    %10 = vsyncpa [#allocation6], 0
    %11 = vsyncpa [#allocation4], 0
    // Predicated region
    $region2: #{tpu_custom_call.1} parent=1 // pred_check
      _
    $region3: #{tpu_custom_call.1} parent=1 // pred_check_branch
      %13 = sbr.rel (0) target = $region5
    $region4: #{tpu_custom_call.1} parent=1 // pred_region
      %15 = vsyncadd [#allocation3], 0
      %s16 = sshll.u32 %s0, 4
      %s17 = int_to_ptr.hbm [resolvable:$true] %s16
      %s18 = sshll.u32 [#allocation2], 4
      %s19 = int_to_ptr.vmem [resolvable:$true] %s18
      %24 = dma.hbm_to_vmem [thread:$0]  %s17, 256, %s19, [#allocation3], 128, 128, 8
    $region5: #{tpu_custom_call.1} parent=1 // pred_fallthru
      _
    // Predicated region
    $region6: #{tpu_custom_call.1} parent=1 // pred_check
      _
    $region7: #{tpu_custom_call.1} parent=1 // pred_check_branch
      %26 = sbr.rel (0) target = $region9
    $region8: #{tpu_custom_call.1} parent=1 // pred_region
      _
    $region9: #{tpu_custom_call.1} parent=1 // pred_fallthru
      _
    // Predicated region
    $region10: #{tpu_custom_call.1} parent=1 // pred_check
      _
    $region11: #{tpu_custom_call.1} parent=1 // pred_check_branch
      %28 = sbr.rel (0) target = $region13
    $region12: #{tpu_custom_call.1} parent=1 // pred_region
      _
    $region13: #{tpu_custom_call.1} parent=1 // pred_fallthru
      _
    // Predicated region
    $region14: #{tpu_custom_call.1} parent=1 // pred_check
      _
    $region15: #{tpu_custom_call.1} parent=1 // pred_check_branch
      %30 = sbr.rel (0) target = $region17
    $region16: #{tpu_custom_call.1} parent=1 // pred_region
      %32 = vsyncadd [#allocation6], 0
      %s34 = sshll.u32 %s3, 4
      %s35 = int_to_ptr.hbm [resolvable:$true] %s34
      %s36 = sshll.u32 [#allocation5], 4
      %s37 = int_to_ptr.vmem [resolvable:$true] %s36
      %39 = dma.hbm_to_vmem [thread:$0]  %s35, 128, %s37, [#allocation6]
    $region17: #{tpu_custom_call.1} parent=1 // pred_fallthru
      _
    // Predicated region
    $region18: #{tpu_custom_call.1} parent=1 // pred_check
      _
    $region19: #{tpu_custom_call.1} parent=1 // pred_check_branch
      %41 = sbr.rel (0) target = $region21
    $region20: #{tpu_custom_call.1} parent=1 // pred_region
      %43 = dma.done [#allocation3], 256
    $region21: #{tpu_custom_call.1} parent=1 // pred_fallthru
      _
    // Predicated region
    $region22: #{tpu_custom_call.1} parent=1 // pred_check
      _
    $region23: #{tpu_custom_call.1} parent=1 // pred_check_branch
      %45 = sbr.rel (0) target = $region25
    $region24: #{tpu_custom_call.1} parent=1 // pred_region
      %47 = dma.done [#allocation6], 128
    $region25: #{tpu_custom_call.1} parent=1 // pred_fallthru
      _
    %v48 = vld [vmem:[#allocation2] sm:$0xff]
    %v49 = vld [vmem:[#allocation2 + $0x8] sm:$0xff]
    %v50 = vld [vmem:[%s1] sm:$0xff]
    %v51 = vld [vmem:[%s1 + $0x18] sm:$0xff]
    %v52 = vld [vmem:[%s1 + $0x30] sm:$0xff]
    %v53 = vld [vmem:[%s1 + $0x48] sm:$0xff]
    %v54 = vld [vmem:[%s1 + $0x8] sm:$0xff]
    %v55 = vld [vmem:[%s1 + $0x20] sm:$0xff]
    %v56 = vld [vmem:[%s1 + $0x38] sm:$0xff]
    %v57 = vld [vmem:[%s1 + $0x50] sm:$0xff]
    %v58 = vld [vmem:[%s1 + $0x10] sm:$0xff]
    %v59 = vld [vmem:[%s1 + $0x28] sm:$0xff]
    %v60 = vld [vmem:[%s1 + $0x40] sm:$0xff]
    %v61 = vld [vmem:[%s1 + $0x58] sm:$0xff]
    %v62 = vld [vmem:[%s2] sm:$0xff]
    %v63 = vld [vmem:[%s2 + $0x8] sm:$0xff]
    %v64 = vld [vmem:[%s2 + $0x10] sm:$0xff]
    %v65 = vld [vmem:[%s2 + $0x18] sm:$0xff]
    %v66 = vld [vmem:[%s2 + $0x20] sm:$0xff]
    %v67 = vld [vmem:[%s2 + $0x28] sm:$0xff]
    %v68 = vld [vmem:[%s2 + $0x30] sm:$0xff]
    %v69 = vld [vmem:[%s2 + $0x38] sm:$0xff]
    %v70 = vld [vmem:[#allocation5] sm:$0x1]
    %v71 = vld [vmem:[#allocation5 + $0x1] sm:$0x1]
    %v72 = vld [vmem:[#allocation5 + $0x2] sm:$0x1]
    %v73 = vld [vmem:[#allocation5 + $0x3] sm:$0x1]
    %v74 = vld [vmem:[#allocation5 + $0x4] sm:$0x1]
    %v75 = vld [vmem:[#allocation5 + $0x5] sm:$0x1]
    %v76 = vld [vmem:[#allocation5 + $0x6] sm:$0x1]
    %v77 = vld [vmem:[#allocation5 + $0x7] sm:$0x1]
    %v78 = vperm.slane %v70, 0
    %vm79 = vcmask 261120
    %v81 = vsel %vm79, %v48, 0
    %v84 = vsel %vm79, %v49, 0
    %86 = vmatpush.msra.mxu0 0.0
    %87 = vmatpush.msra.mxu0 0.0
    %88 = vmatpush.msra.mxu0 0.0
    %89 = vmatpush.msra.mxu0 0.0
    %90 = vmatpush.msra.mxu0 0.0
    %91 = vmatpush.msra.mxu0 0.0
    %92 = vmatpush.msra.mxu0 0.0
    %93 = vmatpush.msra.mxu0 0.0
    %94 = vmatpush.msra.mxu0 0.0
    %95 = vmatpush.msra.mxu0 0.0
    %96 = vmatpush.msra.mxu0 0.0
    %97 = vmatpush.msra.mxu0 0.0
    %98 = vmatpush.msra.mxu0 %v53
    %99 = vmatpush.msra.mxu0 %v52
    %100 = vmatpush.msra.mxu0 %v51
    %101 = vmatpush.msra.mxu0 %v50
    %102 = vmatmul.f32.gmra.mxu0 %v81
    %v103 = vpop.f32.mrf.mxu0
    %v104 = vadd.f32 %v78, %v103
    %105 = vmatmul.f32.gmra.mxu0 %v84
    %v106 = vpop.f32.mrf.mxu0
    %v107 = vadd.f32 %v78, %v106
    %108 = vdwg.mxu0
    %110 = vrot.lane.b32.xlu0 %v104, 96
    %v111 = vpop.permute.xlu0 %110
    %vm112 = vcmask 64512
    %v113 = vsel %vm112, %v104, 0
    %v115 = vsel %vm112, %v111, 0
    %117 = vmatpush.xpose.msra.mxu0 0.0
    %118 = vmatpush.xpose.msra.mxu0 0.0
    %119 = vmatpush.xpose.msra.mxu0 0.0
    %120 = vmatpush.xpose.msra.mxu0 0.0
    %121 = vmatpush.xpose.msra.mxu0 0.0
    %122 = vmatpush.xpose.msra.mxu0 0.0
    %123 = vmatpush.xpose.msra.mxu0 0.0
    %124 = vmatpush.xpose.msra.mxu0 0.0
    %125 = vmatpush.xpose.msra.mxu0 0.0
    %126 = vmatpush.xpose.msra.mxu0 0.0
    %127 = vmatpush.xpose.msra.mxu0 0.0
    %128 = vmatpush.xpose.msra.mxu0 0.0
    %129 = vmatpush.xpose.msra.mxu0 0.0
    %130 = vmatpush.xpose.msra.mxu0 0.0
    %131 = vmatpush.xpose.msra.mxu0 0.0
    %132 = vmatpush.xpose.msra.mxu0 %v115
    %133 = vmatmul.f32.gmra.mxu0 %v113
    %v134 = vpop.f32.mrf.mxu0
    %v135 = vadd.f32 0.0, %v134
    %136 = vdwg.mxu0
    %138 = vrot.lane.b32.xlu0 %v107, 96
    %v139 = vpop.permute.xlu0 %138
    %v140 = vsel %vm112, %v107, 0
    %v142 = vsel %vm112, %v139, 0
    %144 = vmatpush.xpose.msra.mxu0 0.0
    %145 = vmatpush.xpose.msra.mxu0 0.0
    %146 = vmatpush.xpose.msra.mxu0 0.0
    %147 = vmatpush.xpose.msra.mxu0 0.0
    %148 = vmatpush.xpose.msra.mxu0 0.0
    %149 = vmatpush.xpose.msra.mxu0 0.0
    %150 = vmatpush.xpose.msra.mxu0 0.0
    %151 = vmatpush.xpose.msra.mxu0 0.0
    %152 = vmatpush.xpose.msra.mxu0 0.0
    %153 = vmatpush.xpose.msra.mxu0 0.0
    %154 = vmatpush.xpose.msra.mxu0 0.0
    %155 = vmatpush.xpose.msra.mxu0 0.0
    %156 = vmatpush.xpose.msra.mxu0 0.0
    %157 = vmatpush.xpose.msra.mxu0 0.0
    %158 = vmatpush.xpose.msra.mxu0 0.0
    %159 = vmatpush.xpose.msra.mxu0 %v142
    %160 = vmatmul.f32.gmra.mxu0 %v140
    %v161 = vpop.f32.mrf.mxu0
    %v162 = vadd.f32 0.0, %v161
    %163 = vdwg.mxu0
    %v164 = vmul.f32 %v135, 0.35355338
    %v165 = vmul.f32 %v162, 0.35355338
    %v166 = vsel %vm112, %v164, -inf
    %167 = vmax.xlane.f32.xlu0 %v166
    %v168 = vpop.xlane.xlu0 %167
    %v169 = vsel %vm112, %v165, -inf
    %170 = vmax.xlane.f32.xlu0 %v169
    %v171 = vpop.xlane.xlu0 %170
    %v172 = vsub.f32 %v164, %v168
    %v173 = vsub.f32 %v165, %v171
    %v174 = vmul.f32 %v172, 1.442695
    %v175 = vpow.pop %v174
    %v176 = vmul.f32 %v173, 1.442695
    %v177 = vpow.pop %v176
    %v178 = vsel %vm112, %v175, 0.0
    %179 = vadd.xlane.f32.xlu0 %v178
    %v180 = vpop.xlane.xlu0 %179
    %v181 = vsel %vm112, %v177, 0.0
    %182 = vadd.xlane.f32.xlu0 %v181
    %v183 = vpop.xlane.xlu0 %182
    %v184 = vrcp.pop %v180
    %v185 = vmul.f32 %v180, %v184
    %v186 = vsub.f32 1.0, %v185
    %v187 = vmul.f32 %v184, %v186
    %v188 = vadd.f32 %v184, %v187
    %vm189 = vweird.f32 %v180
    %vm190 = vweird.f32 %v184
    %vm191 = vmor %vm189, %vm190
    %v192 = vsel %vm191, %v184, %v188
    %v193 = vand.u32 2147483647, %v180
    %vm194 = vcmp.eq.f32.partialorder %v193, 8.507059e+37
    %v195 = vand.u32 %v180, 2147483648
    %v196 = vor.u32 1.1754944e-38, %v195
    %v197 = vsel %vm194, %v196, %v192
    %v198 = vmul.f32 %v175, %v197
    %v199 = vrcp.pop %v183
    %v200 = vmul.f32 %v183, %v199
    %v201 = vsub.f32 1.0, %v200
    %v202 = vmul.f32 %v199, %v201
    %v203 = vadd.f32 %v199, %v202
    %vm204 = vweird.f32 %v183
    %vm205 = vweird.f32 %v199
    %vm206 = vmor %vm204, %vm205
    %v207 = vsel %vm206, %v199, %v203
    %v208 = vand.u32 2147483647, %v183
    %vm209 = vcmp.eq.f32.partialorder %v208, 8.507059e+37
    %v210 = vand.u32 %v183, 2147483648
    %v211 = vor.u32 1.1754944e-38, %v210
    %v212 = vsel %vm209, %v211, %v207
    %v213 = vmul.f32 %v177, %v212
    %214 = vrot.lane.b32.xlu0 %v104, 64
    %v215 = vpop.permute.xlu0 %214
    %v218 = vsel %vm112, %v198, 0
    %220 = vmatpush.msra.mxu0 0.0
    %221 = vmatpush.msra.mxu0 0.0
    %222 = vmatpush.msra.mxu0 0.0
    %223 = vmatpush.msra.mxu0 0.0
    %224 = vmatpush.msra.mxu0 0.0
    %225 = vmatpush.msra.mxu0 0.0
    %226 = vmatpush.msra.mxu0 0.0
    %227 = vmatpush.msra.mxu0 0.0
    %228 = vmatpush.msra.mxu0 0.0
    %229 = vmatpush.msra.mxu0 0.0
    %230 = vmatpush.msra.mxu0 0.0
    %231 = vmatpush.msra.mxu0 0.0
    %232 = vmatpush.msra.mxu0 0.0
    %233 = vmatpush.msra.mxu0 0.0
    %234 = vmatpush.msra.mxu0 0.0
    %235 = vmatpush.msra.mxu0 %v215
    %236 = vmatmul.f32.gmra.mxu0 %v218
    %v237 = vpop.f32.mrf.mxu0
    %v238 = vadd.f32 0.0, %v237
    %239 = vdwg.mxu0
    %240 = vrot.lane.b32.xlu0 %v107, 64
    %v241 = vpop.permute.xlu0 %240
    %v244 = vsel %vm112, %v213, 0
    %246 = vmatpush.msra.mxu0 0.0
    %247 = vmatpush.msra.mxu0 0.0
    %248 = vmatpush.msra.mxu0 0.0
    %249 = vmatpush.msra.mxu0 0.0
    %250 = vmatpush.msra.mxu0 0.0
    %251 = vmatpush.msra.mxu0 0.0
    %252 = vmatpush.msra.mxu0 0.0
    %253 = vmatpush.msra.mxu0 0.0
    %254 = vmatpush.msra.mxu0 0.0
    %255 = vmatpush.msra.mxu0 0.0
    %256 = vmatpush.msra.mxu0 0.0
    %257 = vmatpush.msra.mxu0 0.0
    %258 = vmatpush.msra.mxu0 0.0
    %259 = vmatpush.msra.mxu0 0.0
    %260 = vmatpush.msra.mxu0 0.0
    %261 = vmatpush.msra.mxu0 %v241
    %262 = vmatmul.f32.gmra.mxu0 %v244
    %v263 = vpop.f32.mrf.mxu0
    %v264 = vadd.f32 0.0, %v263
    %265 = vdwg.mxu0
    %266 = vrot.lane.b32.xlu0 %v104, 120
    %v267 = vpop.permute.xlu0 %266
    %268 = vrot.lane.b32.xlu0 %v104, 88
    %v269 = vpop.permute.xlu0 %268
    %v270 = vsel %vm112, %v267, 0
    %v272 = vsel %vm112, %v269, 0
    %274 = vmatpush.xpose.msra.mxu0 0.0
    %275 = vmatpush.xpose.msra.mxu0 0.0
    %276 = vmatpush.xpose.msra.mxu0 0.0
    %277 = vmatpush.xpose.msra.mxu0 0.0
    %278 = vmatpush.xpose.msra.mxu0 0.0
    %279 = vmatpush.xpose.msra.mxu0 0.0
    %280 = vmatpush.xpose.msra.mxu0 0.0
    %281 = vmatpush.xpose.msra.mxu0 0.0
    %282 = vmatpush.xpose.msra.mxu0 0.0
    %283 = vmatpush.xpose.msra.mxu0 0.0
    %284 = vmatpush.xpose.msra.mxu0 0.0
    %285 = vmatpush.xpose.msra.mxu0 0.0
    %286 = vmatpush.xpose.msra.mxu0 0.0
    %287 = vmatpush.xpose.msra.mxu0 0.0
    %288 = vmatpush.xpose.msra.mxu0 0.0
    %289 = vmatpush.xpose.msra.mxu0 %v272
    %290 = vmatmul.f32.gmra.mxu0 %v270
    %v291 = vpop.f32.mrf.mxu0
    %v292 = vadd.f32 0.0, %v291
    %293 = vdwg.mxu0
    %294 = vrot.lane.b32.xlu0 %v107, 120
    %v295 = vpop.permute.xlu0 %294
    %296 = vrot.lane.b32.xlu0 %v107, 88
    %v297 = vpop.permute.xlu0 %296
    %v298 = vsel %vm112, %v295, 0
    %v300 = vsel %vm112, %v297, 0
    %302 = vmatpush.xpose.msra.mxu0 0.0
    %303 = vmatpush.xpose.msra.mxu0 0.0
    %304 = vmatpush.xpose.msra.mxu0 0.0
    %305 = vmatpush.xpose.msra.mxu0 0.0
    %306 = vmatpush.xpose.msra.mxu0 0.0
    %307 = vmatpush.xpose.msra.mxu0 0.0
    %308 = vmatpush.xpose.msra.mxu0 0.0
    %309 = vmatpush.xpose.msra.mxu0 0.0
    %310 = vmatpush.xpose.msra.mxu0 0.0
    %311 = vmatpush.xpose.msra.mxu0 0.0
    %312 = vmatpush.xpose.msra.mxu0 0.0
    %313 = vmatpush.xpose.msra.mxu0 0.0
    %314 = vmatpush.xpose.msra.mxu0 0.0
    %315 = vmatpush.xpose.msra.mxu0 0.0
    %316 = vmatpush.xpose.msra.mxu0 0.0
    %317 = vmatpush.xpose.msra.mxu0 %v300
    %318 = vmatmul.f32.gmra.mxu0 %v298
    %v319 = vpop.f32.mrf.mxu0
    %v320 = vadd.f32 0.0, %v319
    %321 = vdwg.mxu0
    %v322 = vmul.f32 %v292, 0.35355338
    %v323 = vmul.f32 %v320, 0.35355338
    %v324 = vsel %vm112, %v322, -inf
    %325 = vmax.xlane.f32.xlu0 %v324
    %v326 = vpop.xlane.xlu0 %325
    %v327 = vsel %vm112, %v323, -inf
    %328 = vmax.xlane.f32.xlu0 %v327
    %v329 = vpop.xlane.xlu0 %328
    %v330 = vsub.f32 %v322, %v326
    %v331 = vsub.f32 %v323, %v329
    %v332 = vmul.f32 %v330, 1.442695
    %v333 = vpow.pop %v332
    %v334 = vmul.f32 %v331, 1.442695
    %v335 = vpow.pop %v334
    %v336 = vsel %vm112, %v333, 0.0
    %337 = vadd.xlane.f32.xlu0 %v336
    %v338 = vpop.xlane.xlu0 %337
    %v339 = vsel %vm112, %v335, 0.0
    %340 = vadd.xlane.f32.xlu0 %v339
    %v341 = vpop.xlane.xlu0 %340
    %v342 = vrcp.pop %v338
    %v343 = vmul.f32 %v338, %v342
    %v344 = vsub.f32 1.0, %v343
    %v345 = vmul.f32 %v342, %v344
    %v346 = vadd.f32 %v342, %v345
    %vm347 = vweird.f32 %v338
    %vm348 = vweird.f32 %v342
    %vm349 = vmor %vm347, %vm348
    %v350 = vsel %vm349, %v342, %v346
    %v351 = vand.u32 2147483647, %v338
    %vm352 = vcmp.eq.f32.partialorder %v351, 8.507059e+37
    %v353 = vand.u32 %v338, 2147483648
    %v354 = vor.u32 1.1754944e-38, %v353
    %v355 = vsel %vm352, %v354, %v350
    %v356 = vmul.f32 %v333, %v355
    %v357 = vrcp.pop %v341
    %v358 = vmul.f32 %v341, %v357
    %v359 = vsub.f32 1.0, %v358
    %v360 = vmul.f32 %v357, %v359
    %v361 = vadd.f32 %v357, %v360
    %vm362 = vweird.f32 %v341
    %vm363 = vweird.f32 %v357
    %vm364 = vmor %vm362, %vm363
    %v365 = vsel %vm364, %v357, %v361
    %v366 = vand.u32 2147483647, %v341
    %vm367 = vcmp.eq.f32.partialorder %v366, 8.507059e+37
    %v368 = vand.u32 %v341, 2147483648
    %v369 = vor.u32 1.1754944e-38, %v368
    %v370 = vsel %vm367, %v369, %v365
    %v371 = vmul.f32 %v335, %v370
    %372 = vrot.lane.b32.xlu0 %v104, 56
    %v373 = vpop.permute.xlu0 %372
    %v376 = vsel %vm112, %v356, 0
    %378 = vmatpush.msra.mxu0 0.0
    %379 = vmatpush.msra.mxu0 0.0
    %380 = vmatpush.msra.mxu0 0.0
    %381 = vmatpush.msra.mxu0 0.0
    %382 = vmatpush.msra.mxu0 0.0
    %383 = vmatpush.msra.mxu0 0.0
    %384 = vmatpush.msra.mxu0 0.0
    %385 = vmatpush.msra.mxu0 0.0
    %386 = vmatpush.msra.mxu0 0.0
    %387 = vmatpush.msra.mxu0 0.0
    %388 = vmatpush.msra.mxu0 0.0
    %389 = vmatpush.msra.mxu0 0.0
    %390 = vmatpush.msra.mxu0 0.0
    %391 = vmatpush.msra.mxu0 0.0
    %392 = vmatpush.msra.mxu0 0.0
    %393 = vmatpush.msra.mxu0 %v373
    %394 = vmatmul.f32.gmra.mxu0 %v376
    %v395 = vpop.f32.mrf.mxu0
    %v396 = vadd.f32 0.0, %v395
    %397 = vdwg.mxu0
    %398 = vrot.lane.b32.xlu0 %v107, 56
    %v399 = vpop.permute.xlu0 %398
    %v402 = vsel %vm112, %v371, 0
    %404 = vmatpush.msra.mxu0 0.0
    %405 = vmatpush.msra.mxu0 0.0
    %406 = vmatpush.msra.mxu0 0.0
    %407 = vmatpush.msra.mxu0 0.0
    %408 = vmatpush.msra.mxu0 0.0
    %409 = vmatpush.msra.mxu0 0.0
    %410 = vmatpush.msra.mxu0 0.0
    %411 = vmatpush.msra.mxu0 0.0
    %412 = vmatpush.msra.mxu0 0.0
    %413 = vmatpush.msra.mxu0 0.0
    %414 = vmatpush.msra.mxu0 0.0
    %415 = vmatpush.msra.mxu0 0.0
    %416 = vmatpush.msra.mxu0 0.0
    %417 = vmatpush.msra.mxu0 0.0
    %418 = vmatpush.msra.mxu0 0.0
    %419 = vmatpush.msra.mxu0 %v399
    %420 = vmatmul.f32.gmra.mxu0 %v402
    %v421 = vpop.f32.mrf.mxu0
    %v422 = vadd.f32 0.0, %v421
    %423 = vdwg.mxu0
    %v425 = vsel %vm112, %v396, 0
    %v428 = vsel %vm112, %v422, 0
    %430 = vmatpush.msra.mxu0 0.0
    %431 = vmatpush.msra.mxu0 0.0
    %432 = vmatpush.msra.mxu0 0.0
    %433 = vmatpush.msra.mxu0 0.0
    %434 = vmatpush.msra.mxu0 0.0
    %435 = vmatpush.msra.mxu0 0.0
    %436 = vmatpush.msra.mxu0 0.0
    %437 = vmatpush.msra.mxu0 0.0
    %438 = vmatpush.msra.mxu0 0.0
    %439 = vmatpush.msra.mxu0 0.0
    %440 = vmatpush.msra.mxu0 0.0
    %441 = vmatpush.msra.mxu0 0.0
    %442 = vmatpush.msra.mxu0 0.0
    %443 = vmatpush.msra.mxu0 0.0
    %444 = vmatpush.msra.mxu0 0.0
    %445 = vmatpush.msra.mxu0 %v55
    %446 = vmatmul.f32.gmra.mxu0 %v425
    %v447 = vpop.f32.mrf.mxu0
    %v448 = vadd.f32 0.0, %v447
    %449 = vmatmul.f32.gmra.mxu0 %v428
    %v450 = vpop.f32.mrf.mxu0
    %v451 = vadd.f32 0.0, %v450
    %452 = vdwg.mxu0
    %v454 = vsel %vm112, %v238, 0
    %v457 = vsel %vm112, %v264, 0
    %459 = vmatpush.msra.mxu0 0.0
    %460 = vmatpush.msra.mxu0 0.0
    %461 = vmatpush.msra.mxu0 0.0
    %462 = vmatpush.msra.mxu0 0.0
    %463 = vmatpush.msra.mxu0 0.0
    %464 = vmatpush.msra.mxu0 0.0
    %465 = vmatpush.msra.mxu0 0.0
    %466 = vmatpush.msra.mxu0 0.0
    %467 = vmatpush.msra.mxu0 0.0
    %468 = vmatpush.msra.mxu0 0.0
    %469 = vmatpush.msra.mxu0 0.0
    %470 = vmatpush.msra.mxu0 0.0
    %471 = vmatpush.msra.mxu0 0.0
    %472 = vmatpush.msra.mxu0 0.0
    %473 = vmatpush.msra.mxu0 0.0
    %474 = vmatpush.msra.mxu0 %v54
    %475 = vmatmul.f32.gmra.mxu0 %v454
    %v476 = vpop.f32.mrf.mxu0
    %v477 = vadd.f32 %v448, %v476
    %478 = vmatmul.f32.gmra.mxu0 %v457
    %v479 = vpop.f32.mrf.mxu0
    %v480 = vadd.f32 %v451, %v479
    %481 = vdwg.mxu0
    %482 = vrot.lane.b32.xlu0 %v104, 112
    %v483 = vpop.permute.xlu0 %482
    %484 = vrot.lane.b32.xlu0 %v104, 80
    %v485 = vpop.permute.xlu0 %484
    %v486 = vsel %vm112, %v483, 0
    %v488 = vsel %vm112, %v485, 0
    %490 = vmatpush.xpose.msra.mxu0 0.0
    %491 = vmatpush.xpose.msra.mxu0 0.0
    %492 = vmatpush.xpose.msra.mxu0 0.0
    %493 = vmatpush.xpose.msra.mxu0 0.0
    %494 = vmatpush.xpose.msra.mxu0 0.0
    %495 = vmatpush.xpose.msra.mxu0 0.0
    %496 = vmatpush.xpose.msra.mxu0 0.0
    %497 = vmatpush.xpose.msra.mxu0 0.0
    %498 = vmatpush.xpose.msra.mxu0 0.0
    %499 = vmatpush.xpose.msra.mxu0 0.0
    %500 = vmatpush.xpose.msra.mxu0 0.0
    %501 = vmatpush.xpose.msra.mxu0 0.0
    %502 = vmatpush.xpose.msra.mxu0 0.0
    %503 = vmatpush.xpose.msra.mxu0 0.0
    %504 = vmatpush.xpose.msra.mxu0 0.0
    %505 = vmatpush.xpose.msra.mxu0 %v488
    %506 = vmatmul.f32.gmra.mxu0 %v486
    %v507 = vpop.f32.mrf.mxu0
    %v508 = vadd.f32 0.0, %v507
    %509 = vdwg.mxu0
    %510 = vrot.lane.b32.xlu0 %v107, 112
    %v511 = vpop.permute.xlu0 %510
    %512 = vrot.lane.b32.xlu0 %v107, 80
    %v513 = vpop.permute.xlu0 %512
    %v514 = vsel %vm112, %v511, 0
    %v516 = vsel %vm112, %v513, 0
    %518 = vmatpush.xpose.msra.mxu0 0.0
    %519 = vmatpush.xpose.msra.mxu0 0.0
    %520 = vmatpush.xpose.msra.mxu0 0.0
    %521 = vmatpush.xpose.msra.mxu0 0.0
    %522 = vmatpush.xpose.msra.mxu0 0.0
    %523 = vmatpush.xpose.msra.mxu0 0.0
    %524 = vmatpush.xpose.msra.mxu0 0.0
    %525 = vmatpush.xpose.msra.mxu0 0.0
    %526 = vmatpush.xpose.msra.mxu0 0.0
    %527 = vmatpush.xpose.msra.mxu0 0.0
    %528 = vmatpush.xpose.msra.mxu0 0.0
    %529 = vmatpush.xpose.msra.mxu0 0.0
    %530 = vmatpush.xpose.msra.mxu0 0.0
    %531 = vmatpush.xpose.msra.mxu0 0.0
    %532 = vmatpush.xpose.msra.mxu0 0.0
    %533 = vmatpush.xpose.msra.mxu0 %v516
    %534 = vmatmul.f32.gmra.mxu0 %v514
    %v535 = vpop.f32.mrf.mxu0
    %v536 = vadd.f32 0.0, %v535
    %537 = vdwg.mxu0
    %v538 = vmul.f32 %v508, 0.35355338
    %v539 = vmul.f32 %v536, 0.35355338
    %v540 = vsel %vm112, %v538, -inf
    %541 = vmax.xlane.f32.xlu0 %v540
    %v542 = vpop.xlane.xlu0 %541
    %v543 = vsel %vm112, %v539, -inf
    %544 = vmax.xlane.f32.xlu0 %v543
    %v545 = vpop.xlane.xlu0 %544
    %v546 = vsub.f32 %v538, %v542
    %v547 = vsub.f32 %v539, %v545
    %v548 = vmul.f32 %v546, 1.442695
    %v549 = vpow.pop %v548
    %v550 = vmul.f32 %v547, 1.442695
    %v551 = vpow.pop %v550
    %v552 = vsel %vm112, %v549, 0.0
    %553 = vadd.xlane.f32.xlu0 %v552
    %v554 = vpop.xlane.xlu0 %553
    %v555 = vsel %vm112, %v551, 0.0
    %556 = vadd.xlane.f32.xlu0 %v555
    %v557 = vpop.xlane.xlu0 %556
    %v558 = vrcp.pop %v554
    %v559 = vmul.f32 %v554, %v558
    %v560 = vsub.f32 1.0, %v559
    %v561 = vmul.f32 %v558, %v560
    %v562 = vadd.f32 %v558, %v561
    %vm563 = vweird.f32 %v554
    %vm564 = vweird.f32 %v558
    %vm565 = vmor %vm563, %vm564
    %v566 = vsel %vm565, %v558, %v562
    %v567 = vand.u32 2147483647, %v554
    %vm568 = vcmp.eq.f32.partialorder %v567, 8.507059e+37
    %v569 = vand.u32 %v554, 2147483648
    %v570 = vor.u32 1.1754944e-38, %v569
    %v571 = vsel %vm568, %v570, %v566
    %v572 = vmul.f32 %v549, %v571
    %v573 = vrcp.pop %v557
    %v574 = vmul.f32 %v557, %v573
    %v575 = vsub.f32 1.0, %v574
    %v576 = vmul.f32 %v573, %v575
    %v577 = vadd.f32 %v573, %v576
    %vm578 = vweird.f32 %v557
    %vm579 = vweird.f32 %v573
    %vm580 = vmor %vm578, %vm579
    %v581 = vsel %vm580, %v573, %v577
    %v582 = vand.u32 2147483647, %v557
    %vm583 = vcmp.eq.f32.partialorder %v582, 8.507059e+37
    %v584 = vand.u32 %v557, 2147483648
    %v585 = vor.u32 1.1754944e-38, %v584
    %v586 = vsel %vm583, %v585, %v581
    %v587 = vmul.f32 %v551, %v586
    %588 = vrot.lane.b32.xlu0 %v104, 48
    %v589 = vpop.permute.xlu0 %588
    %v592 = vsel %vm112, %v572, 0
    %594 = vmatpush.msra.mxu0 0.0
    %595 = vmatpush.msra.mxu0 0.0
    %596 = vmatpush.msra.mxu0 0.0
    %597 = vmatpush.msra.mxu0 0.0
    %598 = vmatpush.msra.mxu0 0.0
    %599 = vmatpush.msra.mxu0 0.0
    %600 = vmatpush.msra.mxu0 0.0
    %601 = vmatpush.msra.mxu0 0.0
    %602 = vmatpush.msra.mxu0 0.0
    %603 = vmatpush.msra.mxu0 0.0
    %604 = vmatpush.msra.mxu0 0.0
    %605 = vmatpush.msra.mxu0 0.0
    %606 = vmatpush.msra.mxu0 0.0
    %607 = vmatpush.msra.mxu0 0.0
    %608 = vmatpush.msra.mxu0 0.0
    %609 = vmatpush.msra.mxu0 %v589
    %610 = vmatmul.f32.gmra.mxu0 %v592
    %v611 = vpop.f32.mrf.mxu0
    %v612 = vadd.f32 0.0, %v611
    %613 = vdwg.mxu0
    %614 = vrot.lane.b32.xlu0 %v107, 48
    %v615 = vpop.permute.xlu0 %614
    %v618 = vsel %vm112, %v587, 0
    %620 = vmatpush.msra.mxu0 0.0
    %621 = vmatpush.msra.mxu0 0.0
    %622 = vmatpush.msra.mxu0 0.0
    %623 = vmatpush.msra.mxu0 0.0
    %624 = vmatpush.msra.mxu0 0.0
    %625 = vmatpush.msra.mxu0 0.0
    %626 = vmatpush.msra.mxu0 0.0
    %627 = vmatpush.msra.mxu0 0.0
    %628 = vmatpush.msra.mxu0 0.0
    %629 = vmatpush.msra.mxu0 0.0
    %630 = vmatpush.msra.mxu0 0.0
    %631 = vmatpush.msra.mxu0 0.0
    %632 = vmatpush.msra.mxu0 0.0
    %633 = vmatpush.msra.mxu0 0.0
    %634 = vmatpush.msra.mxu0 0.0
    %635 = vmatpush.msra.mxu0 %v615
    %636 = vmatmul.f32.gmra.mxu0 %v618
    %v637 = vpop.f32.mrf.mxu0
    %v638 = vadd.f32 0.0, %v637
    %639 = vdwg.mxu0
    %v641 = vsel %vm112, %v612, 0
    %v644 = vsel %vm112, %v638, 0
    %646 = vmatpush.msra.mxu0 0.0
    %647 = vmatpush.msra.mxu0 0.0
    %648 = vmatpush.msra.mxu0 0.0
    %649 = vmatpush.msra.mxu0 0.0
    %650 = vmatpush.msra.mxu0 0.0
    %651 = vmatpush.msra.mxu0 0.0
    %652 = vmatpush.msra.mxu0 0.0
    %653 = vmatpush.msra.mxu0 0.0
    %654 = vmatpush.msra.mxu0 0.0
    %655 = vmatpush.msra.mxu0 0.0
    %656 = vmatpush.msra.mxu0 0.0
    %657 = vmatpush.msra.mxu0 0.0
    %658 = vmatpush.msra.mxu0 0.0
    %659 = vmatpush.msra.mxu0 0.0
    %660 = vmatpush.msra.mxu0 0.0
    %661 = vmatpush.msra.mxu0 %v56
    %662 = vmatmul.f32.gmra.mxu0 %v641
    %v663 = vpop.f32.mrf.mxu0
    %v664 = vadd.f32 0.0, %v663
    %665 = vmatmul.f32.gmra.mxu0 %v644
    %v666 = vpop.f32.mrf.mxu0
    %v667 = vadd.f32 0.0, %v666
    %668 = vdwg.mxu0
    %v669 = vadd.f32 %v477, %v664
    %v670 = vadd.f32 %v480, %v667
    %671 = vrot.lane.b32.xlu0 %v104, 104
    %v672 = vpop.permute.xlu0 %671
    %673 = vrot.lane.b32.xlu0 %v104, 72
    %v674 = vpop.permute.xlu0 %673
    %v675 = vsel %vm112, %v672, 0
    %v677 = vsel %vm112, %v674, 0
    %679 = vmatpush.xpose.msra.mxu0 0.0
    %680 = vmatpush.xpose.msra.mxu0 0.0
    %681 = vmatpush.xpose.msra.mxu0 0.0
    %682 = vmatpush.xpose.msra.mxu0 0.0
    %683 = vmatpush.xpose.msra.mxu0 0.0
    %684 = vmatpush.xpose.msra.mxu0 0.0
    %685 = vmatpush.xpose.msra.mxu0 0.0
    %686 = vmatpush.xpose.msra.mxu0 0.0
    %687 = vmatpush.xpose.msra.mxu0 0.0
    %688 = vmatpush.xpose.msra.mxu0 0.0
    %689 = vmatpush.xpose.msra.mxu0 0.0
    %690 = vmatpush.xpose.msra.mxu0 0.0
    %691 = vmatpush.xpose.msra.mxu0 0.0
    %692 = vmatpush.xpose.msra.mxu0 0.0
    %693 = vmatpush.xpose.msra.mxu0 0.0
    %694 = vmatpush.xpose.msra.mxu0 %v677
    %695 = vmatmul.f32.gmra.mxu0 %v675
    %v696 = vpop.f32.mrf.mxu0
    %v697 = vadd.f32 0.0, %v696
    %698 = vdwg.mxu0
    %699 = vrot.lane.b32.xlu0 %v107, 104
    %v700 = vpop.permute.xlu0 %699
    %701 = vrot.lane.b32.xlu0 %v107, 72
    %v702 = vpop.permute.xlu0 %701
    %v703 = vsel %vm112, %v700, 0
    %v705 = vsel %vm112, %v702, 0
    %707 = vmatpush.xpose.msra.mxu0 0.0
    %708 = vmatpush.xpose.msra.mxu0 0.0
    %709 = vmatpush.xpose.msra.mxu0 0.0
    %710 = vmatpush.xpose.msra.mxu0 0.0
    %711 = vmatpush.xpose.msra.mxu0 0.0
    %712 = vmatpush.xpose.msra.mxu0 0.0
    %713 = vmatpush.xpose.msra.mxu0 0.0
    %714 = vmatpush.xpose.msra.mxu0 0.0
    %715 = vmatpush.xpose.msra.mxu0 0.0
    %716 = vmatpush.xpose.msra.mxu0 0.0
    %717 = vmatpush.xpose.msra.mxu0 0.0
    %718 = vmatpush.xpose.msra.mxu0 0.0
    %719 = vmatpush.xpose.msra.mxu0 0.0
    %720 = vmatpush.xpose.msra.mxu0 0.0
    %721 = vmatpush.xpose.msra.mxu0 0.0
    %722 = vmatpush.xpose.msra.mxu0 %v705
    %723 = vmatmul.f32.gmra.mxu0 %v703
    %v724 = vpop.f32.mrf.mxu0
    %v725 = vadd.f32 0.0, %v724
    %726 = vdwg.mxu0
    %v727 = vmul.f32 %v697, 0.35355338
    %v728 = vmul.f32 %v725, 0.35355338
    %v729 = vsel %vm112, %v727, -inf
    %730 = vmax.xlane.f32.xlu0 %v729
    %v731 = vpop.xlane.xlu0 %730
    %v732 = vsel %vm112, %v728, -inf
    %733 = vmax.xlane.f32.xlu0 %v732
    %v734 = vpop.xlane.xlu0 %733
    %v735 = vsub.f32 %v727, %v731
    %v736 = vsub.f32 %v728, %v734
    %v737 = vmul.f32 %v735, 1.442695
    %v738 = vpow.pop %v737
    %v739 = vmul.f32 %v736, 1.442695
    %v740 = vpow.pop %v739
    %v741 = vsel %vm112, %v738, 0.0
    %742 = vadd.xlane.f32.xlu0 %v741
    %v743 = vpop.xlane.xlu0 %742
    %v744 = vsel %vm112, %v740, 0.0
    %745 = vadd.xlane.f32.xlu0 %v744
    %v746 = vpop.xlane.xlu0 %745
    %v747 = vrcp.pop %v743
    %v748 = vmul.f32 %v743, %v747
    %v749 = vsub.f32 1.0, %v748
    %v750 = vmul.f32 %v747, %v749
    %v751 = vadd.f32 %v747, %v750
    %vm752 = vweird.f32 %v743
    %vm753 = vweird.f32 %v747
    %vm754 = vmor %vm752, %vm753
    %v755 = vsel %vm754, %v747, %v751
    %v756 = vand.u32 2147483647, %v743
    %vm757 = vcmp.eq.f32.partialorder %v756, 8.507059e+37
    %v758 = vand.u32 %v743, 2147483648
    %v759 = vor.u32 1.1754944e-38, %v758
    %v760 = vsel %vm757, %v759, %v755
    %v761 = vmul.f32 %v738, %v760
    %v762 = vrcp.pop %v746
    %v763 = vmul.f32 %v746, %v762
    %v764 = vsub.f32 1.0, %v763
    %v765 = vmul.f32 %v762, %v764
    %v766 = vadd.f32 %v762, %v765
    %vm767 = vweird.f32 %v746
    %vm768 = vweird.f32 %v762
    %vm769 = vmor %vm767, %vm768
    %v770 = vsel %vm769, %v762, %v766
    %v771 = vand.u32 2147483647, %v746
    %vm772 = vcmp.eq.f32.partialorder %v771, 8.507059e+37
    %v773 = vand.u32 %v746, 2147483648
    %v774 = vor.u32 1.1754944e-38, %v773
    %v775 = vsel %vm772, %v774, %v770
    %v776 = vmul.f32 %v740, %v775
    %777 = vrot.lane.b32.xlu0 %v104, 40
    %v778 = vpop.permute.xlu0 %777
    %v781 = vsel %vm112, %v761, 0
    %783 = vmatpush.msra.mxu0 0.0
    %784 = vmatpush.msra.mxu0 0.0
    %785 = vmatpush.msra.mxu0 0.0
    %786 = vmatpush.msra.mxu0 0.0
    %787 = vmatpush.msra.mxu0 0.0
    %788 = vmatpush.msra.mxu0 0.0
    %789 = vmatpush.msra.mxu0 0.0
    %790 = vmatpush.msra.mxu0 0.0
    %791 = vmatpush.msra.mxu0 0.0
    %792 = vmatpush.msra.mxu0 0.0
    %793 = vmatpush.msra.mxu0 0.0
    %794 = vmatpush.msra.mxu0 0.0
    %795 = vmatpush.msra.mxu0 0.0
    %796 = vmatpush.msra.mxu0 0.0
    %797 = vmatpush.msra.mxu0 0.0
    %798 = vmatpush.msra.mxu0 %v778
    %799 = vmatmul.f32.gmra.mxu0 %v781
    %v800 = vpop.f32.mrf.mxu0
    %v801 = vadd.f32 0.0, %v800
    %802 = vdwg.mxu0
    %803 = vrot.lane.b32.xlu0 %v107, 40
    %v804 = vpop.permute.xlu0 %803
    %v807 = vsel %vm112, %v776, 0
    %809 = vmatpush.msra.mxu0 0.0
    %810 = vmatpush.msra.mxu0 0.0
    %811 = vmatpush.msra.mxu0 0.0
    %812 = vmatpush.msra.mxu0 0.0
    %813 = vmatpush.msra.mxu0 0.0
    %814 = vmatpush.msra.mxu0 0.0
    %815 = vmatpush.msra.mxu0 0.0
    %816 = vmatpush.msra.mxu0 0.0
    %817 = vmatpush.msra.mxu0 0.0
    %818 = vmatpush.msra.mxu0 0.0
    %819 = vmatpush.msra.mxu0 0.0
    %820 = vmatpush.msra.mxu0 0.0
    %821 = vmatpush.msra.mxu0 0.0
    %822 = vmatpush.msra.mxu0 0.0
    %823 = vmatpush.msra.mxu0 0.0
    %824 = vmatpush.msra.mxu0 %v804
    %825 = vmatmul.f32.gmra.mxu0 %v807
    %v826 = vpop.f32.mrf.mxu0
    %v827 = vadd.f32 0.0, %v826
    %828 = vdwg.mxu0
    %v830 = vsel %vm112, %v801, 0
    %v833 = vsel %vm112, %v827, 0
    %835 = vmatpush.msra.mxu0 0.0
    %836 = vmatpush.msra.mxu0 0.0
    %837 = vmatpush.msra.mxu0 0.0
    %838 = vmatpush.msra.mxu0 0.0
    %839 = vmatpush.msra.mxu0 0.0
    %840 = vmatpush.msra.mxu0 0.0
    %841 = vmatpush.msra.mxu0 0.0
    %842 = vmatpush.msra.mxu0 0.0
    %843 = vmatpush.msra.mxu0 0.0
    %844 = vmatpush.msra.mxu0 0.0
    %845 = vmatpush.msra.mxu0 0.0
    %846 = vmatpush.msra.mxu0 0.0
    %847 = vmatpush.msra.mxu0 0.0
    %848 = vmatpush.msra.mxu0 0.0
    %849 = vmatpush.msra.mxu0 0.0
    %850 = vmatpush.msra.mxu0 %v57
    %851 = vmatmul.f32.gmra.mxu0 %v830
    %v852 = vpop.f32.mrf.mxu0
    %v853 = vadd.f32 0.0, %v852
    %854 = vmatmul.f32.gmra.mxu0 %v833
    %v855 = vpop.f32.mrf.mxu0
    %v856 = vadd.f32 0.0, %v855
    %857 = vdwg.mxu0
    %v858 = vadd.f32 %v669, %v853
    %v859 = vadd.f32 %v670, %v856
    %v860 = vperm.slane %v71, 0
    %v861 = vadd.f32 %v858, %v860
    %v862 = vadd.f32 %v859, %v860
    %v863 = vadd.f32 %v48, %v861
    %v864 = vadd.f32 %v49, %v862
    %v865 = vsel %vm79, %v863, 0.0
    %866 = vadd.xlane.f32.xlu0 %v865
    %v867 = vpop.xlane.xlu0 %866
    %v868 = vsel %vm79, %v864, 0.0
    %869 = vadd.xlane.f32.xlu0 %v868
    %v870 = vpop.xlane.xlu0 %869
    %v871 = vrcp.pop 32.0
    %v872 = vmul.f32 32.0, %v871
    %v873 = vsub.f32 1.0, %v872
    %v874 = vmul.f32 %v871, %v873
    %v875 = vadd.f32 %v871, %v874
    %vm876 = vweird.f32 %v871
    %v877 = vsel %vm876, %v871, %v875
    %v878 = vmul.f32 %v867, %v877
    %v879 = vmul.f32 %v870, %v877
    %v880 = vsub.f32 %v863, %v878
    %v881 = vsub.f32 %v864, %v879
    %v882 = vmul.f32 %v880, %v880
    %v883 = vmul.f32 %v881, %v881
    %v884 = vsel %vm79, %v882, 0.0
    %885 = vadd.xlane.f32.xlu0 %v884
    %v886 = vpop.xlane.xlu0 %885
    %v887 = vsel %vm79, %v883, 0.0
    %888 = vadd.xlane.f32.xlu0 %v887
    %v889 = vpop.xlane.xlu0 %888
    %v890 = vmul.f32 %v886, %v877
    %v891 = vmul.f32 %v889, %v877
    %v892 = vadd.f32 %v890, 1e-05
    %v893 = vadd.f32 %v891, 1e-05
    %v894 = vrsqrt.pop %v892
    %v895 = vmul.f32 %v894, %v892
    %v896 = vmul.f32 %v895, %v894
    %v897 = vmul.f32 0.5, %v896
    %v898 = vsub.f32 1.5, %v897
    %v899 = vmul.f32 %v894, %v898
    %vm900 = vweird.f32 %v892
    %vm901 = vweird.f32 %v894
    %vm902 = vmor %vm900, %vm901
    %v903 = vsel %vm902, %v894, %v899
    %v904 = vrsqrt.pop %v893
    %v905 = vmul.f32 %v904, %v893
    %v906 = vmul.f32 %v905, %v904
    %v907 = vmul.f32 0.5, %v906
    %v908 = vsub.f32 1.5, %v907
    %v909 = vmul.f32 %v904, %v908
    %vm910 = vweird.f32 %v893
    %vm911 = vweird.f32 %v904
    %vm912 = vmor %vm910, %vm911
    %v913 = vsel %vm912, %v904, %v909
    %v914 = vmul.f32 %v880, %v903
    %v915 = vmul.f32 %v881, %v913
    %v916 = vperm.slane %v72, 0
    %v917 = vmul.f32 %v914, %v916
    %v918 = vmul.f32 %v915, %v916
    %v919 = vperm.slane %v73, 0
    %v920 = vadd.f32 %v917, %v919
    %v921 = vadd.f32 %v918, %v919
    %v922 = vperm.slane %v74, 0
    %v924 = vsel %vm79, %v920, 0
    %v927 = vsel %vm79, %v921, 0
    %929 = vmatpush.msra.mxu0 0.0
    %930 = vmatpush.msra.mxu0 0.0
    %931 = vmatpush.msra.mxu0 0.0
    %932 = vmatpush.msra.mxu0 0.0
    %933 = vmatpush.msra.mxu0 0.0
    %934 = vmatpush.msra.mxu0 0.0
    %935 = vmatpush.msra.mxu0 0.0
    %936 = vmatpush.msra.mxu0 0.0
    %937 = vmatpush.msra.mxu0 0.0
    %938 = vmatpush.msra.mxu0 0.0
    %939 = vmatpush.msra.mxu0 0.0
    %940 = vmatpush.msra.mxu0 0.0
    %941 = vmatpush.msra.mxu0 %v61
    %942 = vmatpush.msra.mxu0 %v60
    %943 = vmatpush.msra.mxu0 %v59
    %944 = vmatpush.msra.mxu0 %v58
    %945 = vmatmul.f32.gmra.mxu0 %v924
    %v946 = vpop.f32.mrf.mxu0
    %v947 = vadd.f32 %v922, %v946
    %948 = vmatmul.f32.gmra.mxu0 %v927
    %v949 = vpop.f32.mrf.mxu0
    %v950 = vadd.f32 %v922, %v949
    %951 = vdwg.mxu0
    %v952 = vmax.f32 %v947, 0.0
    %v953 = vmax.f32 %v950, 0.0
    %v954 = vperm.slane %v75, 0
    %vm955 = vcmask 523264
    %v957 = vsel %vm955, %v952, 0
    %v960 = vsel %vm955, %v953, 0
    %962 = vmatpush.msra.mxu0 0.0
    %963 = vmatpush.msra.mxu0 0.0
    %964 = vmatpush.msra.mxu0 0.0
    %965 = vmatpush.msra.mxu0 0.0
    %966 = vmatpush.msra.mxu0 0.0
    %967 = vmatpush.msra.mxu0 0.0
    %968 = vmatpush.msra.mxu0 0.0
    %969 = vmatpush.msra.mxu0 0.0
    %970 = vmatpush.msra.mxu0 %v69
    %971 = vmatpush.msra.mxu0 %v68
    %972 = vmatpush.msra.mxu0 %v67
    %973 = vmatpush.msra.mxu0 %v66
    %974 = vmatpush.msra.mxu0 %v65
    %975 = vmatpush.msra.mxu0 %v64
    %976 = vmatpush.msra.mxu0 %v63
    %977 = vmatpush.msra.mxu0 %v62
    %978 = vmatmul.f32.gmra.mxu0 %v957
    %v979 = vpop.f32.mrf.mxu0
    %v980 = vadd.f32 %v954, %v979
    %981 = vmatmul.f32.gmra.mxu0 %v960
    %v982 = vpop.f32.mrf.mxu0
    %v983 = vadd.f32 %v954, %v982
    %984 = vdwg.mxu0
    %v985 = vadd.f32 %v920, %v980
    %v986 = vadd.f32 %v921, %v983
    %v987 = vsel %vm79, %v985, 0.0
    %988 = vadd.xlane.f32.xlu0 %v987
    %v989 = vpop.xlane.xlu0 %988
    %v990 = vsel %vm79, %v986, 0.0
    %991 = vadd.xlane.f32.xlu0 %v990
    %v992 = vpop.xlane.xlu0 %991
    %v993 = vmul.f32 %v989, %v877
    %v994 = vmul.f32 %v992, %v877
    %v995 = vsub.f32 %v985, %v993
    %v996 = vsub.f32 %v986, %v994
    %v997 = vmul.f32 %v995, %v995
    %v998 = vmul.f32 %v996, %v996
    %v999 = vsel %vm79, %v997, 0.0
    %1000 = vadd.xlane.f32.xlu0 %v999
    %v1001 = vpop.xlane.xlu0 %1000
    %v1002 = vsel %vm79, %v998, 0.0
    %1003 = vadd.xlane.f32.xlu0 %v1002
    %v1004 = vpop.xlane.xlu0 %1003
    %v1005 = vmul.f32 %v1001, %v877
    %v1006 = vmul.f32 %v1004, %v877
    %v1007 = vadd.f32 %v1005, 1e-05
    %v1008 = vadd.f32 %v1006, 1e-05
    %v1009 = vrsqrt.pop %v1007
    %v1010 = vmul.f32 %v1009, %v1007
    %v1011 = vmul.f32 %v1010, %v1009
    %v1012 = vmul.f32 0.5, %v1011
    %v1013 = vsub.f32 1.5, %v1012
    %v1014 = vmul.f32 %v1009, %v1013
    %vm1015 = vweird.f32 %v1007
    %vm1016 = vweird.f32 %v1009
    %vm1017 = vmor %vm1015, %vm1016
    %v1018 = vsel %vm1017, %v1009, %v1014
    %v1019 = vrsqrt.pop %v1008
    %v1020 = vmul.f32 %v1019, %v1008
    %v1021 = vmul.f32 %v1020, %v1019
    %v1022 = vmul.f32 0.5, %v1021
    %v1023 = vsub.f32 1.5, %v1022
    %v1024 = vmul.f32 %v1019, %v1023
    %vm1025 = vweird.f32 %v1008
    %vm1026 = vweird.f32 %v1019
    %vm1027 = vmor %vm1025, %vm1026
    %v1028 = vsel %vm1027, %v1019, %v1024
    %v1029 = vmul.f32 %v995, %v1018
    %v1030 = vmul.f32 %v996, %v1028
    %v1031 = vperm.slane %v76, 0
    %v1032 = vmul.f32 %v1029, %v1031
    %v1033 = vmul.f32 %v1030, %v1031
    %v1034 = vperm.slane %v77, 0
    %v1035 = vadd.f32 %v1032, %v1034
    %v1036 = vadd.f32 %v1033, %v1034
    %1037 = vst.msk [vmem:[#allocation7] sm:$0xff] %vm79, %v1035
    %1038 = vst.msk [vmem:[#allocation7 + $0x8] sm:$0xff] %vm79, %v1036
    // Predicated region
    $region26: #{tpu_custom_call.1} parent=1 // pred_check
      _
    $region27: #{tpu_custom_call.1} parent=1 // pred_check_branch
      %1040 = sbr.rel (0) target = $region29
    $region28: #{tpu_custom_call.1} parent=1 // pred_region
      %1042 = vsyncadd [#allocation4], 0
      %s1043 = sshll.u32 [#allocation7], 4
      %s1044 = int_to_ptr.vmem [resolvable:$true] %s1043
      %s1045 = sshll.u32 %s4, 4
      %s1046 = int_to_ptr.hbm [resolvable:$true] %s1045
      %1051 = dma.vmem_to_hbm [thread:$0]  %s1044, 256, %s1046, [#allocation4], 128, 128, 8
    $region29: #{tpu_custom_call.1} parent=1 // pred_fallthru
      _
    // Predicated region
    $region30: #{tpu_custom_call.1} parent=1 // pred_check
      _
    $region31: #{tpu_custom_call.1} parent=1 // pred_check_branch
      %1053 = sbr.rel (0) target = $region33
    $region32: #{tpu_custom_call.1} parent=1 // pred_region
      %1055 = dma.done [#allocation4], 256
    $region33: #{tpu_custom_call.1} parent=1 // pred_fallthru
      _
    %1056 = vsyncpa [#allocation3], 1
    %1057 = vsyncpa [#allocation6], 1
    %1058 = vsyncpa [#allocation4], 1

</llo_original>
